<compile_context>
chip_gen: v7x
topology: tpu7x:2x2x1
jax: 0.10.0
libtpu: 0.0.40
codegen_flags: <defaults>
</compile_context>

<pallas_src>
import jax
import jax.numpy as jnp
from jax.experimental import pallas as pl
from jax.experimental.pallas import tpu as pltpu


LANE = 128          # lane width of the packed output slabs
NEG_INF = -1e30     # additive mask value for non-edges


def _round_up(v, m):
    return (v + m - 1) // m * m


# ------------------------------ Pallas kernel -------------------------------

def retro_gat_phi_kernel(x_ref, ea_ref, src_col_ref, dst_col_ref, dst_row_ref,
                         w_ref, a_src_ref, a_dst_ref, wn_ref, we_ref,
                         node_out_ref, edge_out_ref):
    f32 = jnp.float32
    n_pad, d = x_ref.shape
    e_pad, two_k = ea_ref.shape

    # --- tiny parameters: SMEM scalar reads, scalar-path arithmetic ---------
    # node-attention Linear(2,2) (bias-free), summed over its 2 outputs
    c_src = wn_ref[0, 0] + wn_ref[0, 1]
    c_dst = wn_ref[1, 0] + wn_ref[1, 1]
    csrc_coef = c_src * a_src_ref[0, 0]
    cdst_coef = c_dst * a_dst_ref[0, 0]

    # --- node transform h = x @ W (out_d == 1): VPU multiply-reduce ---------
    xv = x_ref[...]
    h_col = xv[:, 0:1] * w_ref[0, 0]
    for k_i in range(1, d):
        h_col = h_col + xv[:, k_i:k_i + 1] * w_ref[k_i, 0]        # [n_pad, 1]

    # --- per-edge pair prediction edge_attr @ W_edge: VPU multiply-reduce ---
    ev = ea_ref[...]
    pp0 = ev[:, 0:1] * we_ref[0, 0]
    pp1 = ev[:, 0:1] * we_ref[0, 1]
    for j in range(1, two_k):
        col = ev[:, j:j + 1]
        pp0 = pp0 + col * we_ref[j, 0]
        pp1 = pp1 + col * we_ref[j, 1]
    e_scalar = pp0 + pp1                                          # [e_pad, 1]

    # --- edge incidence one-hots from iota compares (in-kernel "scatter") ---
    lane_nodes = jax.lax.broadcasted_iota(jnp.int32, (e_pad, n_pad), 1)
    src_onehot = (src_col_ref[...] == lane_nodes).astype(f32)     # [e_pad, n_pad]
    dst_onehot = (dst_col_ref[...] == lane_nodes).astype(f32)     # [e_pad, n_pad]
    row_nodes = jax.lax.broadcasted_iota(jnp.int32, (n_pad, e_pad), 0)
    dst_onehot_t = (dst_row_ref[...] == row_nodes).astype(f32)    # [n_pad, e_pad]

    # --- per-edge attention logit (node scores gathered by one small dot) ---
    node_mix = csrc_coef * src_onehot + cdst_coef * dst_onehot    # [e_pad, n_pad]
    node_term = jnp.dot(node_mix, h_col,
                        preferred_element_type=f32)               # [e_pad, 1]
    edge_logit = node_term + e_scalar
    edge_logit = jnp.where(edge_logit > 0, edge_logit,
                           0.2 * edge_logit)                      # LeakyReLU(0.2)

    # --- dense scatter of post-activation logits, mask folded in ------------
    scat = jnp.dot(dst_onehot_t, edge_logit * src_onehot,
                   preferred_element_type=f32)                    # [n_pad, n_pad]
    cnt = jnp.dot(dst_onehot_t, src_onehot,
                  preferred_element_type=f32)                     # [n_pad, n_pad]
    masked = jnp.where(cnt > 0, scat, f32(NEG_INF))

    # --- masked softmax over incoming edges per destination node ------------
    m = jnp.max(masked, axis=-1, keepdims=True)
    p = jnp.exp(masked - m)
    p = jnp.where(masked > f32(-1e29), p, f32(0.0))  # rows with no edges -> 0
    denom = jnp.sum(p, axis=-1, keepdims=True)
    inv = pl.reciprocal(jnp.maximum(denom, f32(1e-20)), approx=True)
    attn = p * inv                                                # [n_pad, n_pad]

    # --- aggregation: out = attn @ h (single-column RHS) --------------------
    out_col = jnp.dot(attn, h_col, preferred_element_type=f32)    # [n_pad, 1]

    # --- gather attention weights back to edges: attn[dst[e], src[e]] -------
    q = jnp.dot(dst_onehot, attn, preferred_element_type=f32)     # [e_pad, n_pad]
    attn_w = jnp.sum(q * src_onehot, axis=-1, keepdims=True)      # [e_pad, 1]

    # --- lane-dense packed outputs: single full-width [rows, 128] stores ----
    lane_n = jax.lax.broadcasted_iota(jnp.int32, (n_pad, LANE), 1)
    node_out_ref[...] = jnp.where(lane_n == 0, out_col, f32(0.0))

    lane_e = jax.lax.broadcasted_iota(jnp.int32, (e_pad, LANE), 1)
    edge_slab = jnp.where(lane_e == 0, attn_w, f32(0.0))
    edge_slab = jnp.where(lane_e == 1, pp0, edge_slab)
    edge_slab = jnp.where(lane_e == 2, pp1, edge_slab)
    edge_out_ref[...] = edge_slab


# --------------------------------- wrapper ----------------------------------

def retro_gat_phi_forward(params, x, edge_index, edge_attr):
    f32 = jnp.float32
    n, d = x.shape
    e, two_k = edge_attr.shape

    # sublane-align node/edge counts (padded edges use sentinel index -1, so
    # their one-hot rows are all-zero and they contribute nothing)
    n_pad = _round_up(n, 8)
    e_pad = _round_up(e, 8)

    x_p = jnp.zeros((n_pad, d), f32).at[:n].set(x.astype(f32))
    ea_p = jnp.zeros((e_pad, two_k), f32).at[:e].set(edge_attr.astype(f32))
    src = edge_index[0].astype(jnp.int32)
    dst = edge_index[1].astype(jnp.int32)
    src_p = jnp.full((e_pad,), -1, jnp.int32).at[:e].set(src)
    dst_p = jnp.full((e_pad,), -1, jnp.int32).at[:e].set(dst)

    vmem = pl.BlockSpec(memory_space=pltpu.MemorySpace.VMEM)
    smem = pl.BlockSpec(memory_space=pltpu.MemorySpace.SMEM)

    node_slab, edge_slab = pl.pallas_call(
        retro_gat_phi_kernel,
        out_shape=(jax.ShapeDtypeStruct((n_pad, LANE), f32),
                   jax.ShapeDtypeStruct((e_pad, LANE), f32)),
        in_specs=[vmem, vmem, vmem, vmem, vmem,     # x, edge_attr, indices
                  smem, smem, smem, smem, smem],    # tiny params -> SMEM
        out_specs=(vmem, vmem),
    )(x_p, ea_p,
      src_p.reshape(e_pad, 1), dst_p.reshape(e_pad, 1), dst_p.reshape(1, e_pad),
      params["W"].astype(f32), params["a_src"].astype(f32),
      params["a_dst"].astype(f32), params["W_natt"].astype(f32),
      params["W_edge"].astype(f32))

    out = node_slab[:n, 0]              # x.squeeze(-1), out_d == 1
    attn_weights = edge_slab[:e, 0]     # attn[dst[e], src[e]]
    pair_pred = edge_slab[:e, 1:3]      # edge_attr @ W_edge
    return out, attn_weights, pair_pred


# ----------------------------------- main ------------------------------------

if __name__ == "__main__":
    key = jax.random.PRNGKey(0)
    keys = jax.random.split(key, 8)

    # small shapes implied by the module: d input feats, out_d=1, k eigenvectors
    N, d, out_d, k = 16, 4, 1, 4

    x = jax.random.normal(keys[0], (N, d), jnp.float32)

    # deterministic unique edge set (two rings) -> E = 32
    s1 = jnp.arange(N, dtype=jnp.int32)
    d1 = (s1 + 1) % N
    s2 = jnp.arange(N, dtype=jnp.int32)
    d2 = (s2 + 2) % N
    edge_index = jnp.stack([jnp.concatenate([s1, s2]),
                            jnp.concatenate([d1, d2])])          # [2, 32]
    E = edge_index.shape[1]
    edge_attr = jax.random.normal(keys[1], (E, 2 * k), jnp.float32)

    params = dict(
        W=jax.random.normal(keys[2], (d, out_d), jnp.float32) * 0.5,
        a_src=jax.random.normal(keys[3], (out_d, 1), jnp.float32),
        a_dst=jax.random.normal(keys[4], (out_d, 1), jnp.float32),
        W_natt=jax.random.normal(keys[5], (2, 2), jnp.float32),
        W_edge=jax.random.normal(keys[6], (2 * k, 2), jnp.float32) * 0.3,
    )

    out, attn_w, pair_pred = retro_gat_phi_forward(params, x, edge_index,
                                                   edge_attr)
    jax.block_until_ready((out, attn_w, pair_pred))

    assert out.shape == (N,)
    assert attn_w.shape == (E,)
    assert pair_pred.shape == (E, 2)
    assert bool(jnp.all(jnp.isfinite(out)))
    assert bool(jnp.all(jnp.isfinite(attn_w)))
    print("KERNEL_OK")
</pallas_src>

<mosaic_0001>
module attributes {stable_mosaic.version = 11 : i64} {
  func.func @retro_gat_phi_kernel(%arg0: memref<16x4xf32, #tpu.memory_space<vmem>>, %arg1: memref<32x8xf32, #tpu.memory_space<vmem>>, %arg2: memref<32x1xi32, #tpu.memory_space<vmem>>, %arg3: memref<32x1xi32, #tpu.memory_space<vmem>>, %arg4: memref<1x32xi32, #tpu.memory_space<vmem>>, %arg5: memref<4x1xf32, #tpu.memory_space<smem>>, %arg6: memref<1x1xf32, #tpu.memory_space<smem>>, %arg7: memref<1x1xf32, #tpu.memory_space<smem>>, %arg8: memref<2x2xf32, #tpu.memory_space<smem>>, %arg9: memref<8x2xf32, #tpu.memory_space<smem>>, %arg10: memref<16x128xf32, #tpu.memory_space<vmem>>, %arg11: memref<32x128xf32, #tpu.memory_space<vmem>>) attributes {dimension_semantics = [], scalar_prefetch = 0 : i64, scratch_operands = 0 : i64, tpu.core_type = #tpu.core_type<tc>} {
    %c0 = arith.constant 0 : index
    %c0_0 = arith.constant 0 : index
    %0 = memref.load %arg8[%c0, %c0_0] : memref<2x2xf32, #tpu.memory_space<smem>>
    %c0_1 = arith.constant 0 : index
    %c1 = arith.constant 1 : index
    %1 = memref.load %arg8[%c0_1, %c1] : memref<2x2xf32, #tpu.memory_space<smem>>
    %2 = arith.addf %0, %1 : f32
    %c1_2 = arith.constant 1 : index
    %c0_3 = arith.constant 0 : index
    %3 = memref.load %arg8[%c1_2, %c0_3] : memref<2x2xf32, #tpu.memory_space<smem>>
    %c1_4 = arith.constant 1 : index
    %c1_5 = arith.constant 1 : index
    %4 = memref.load %arg8[%c1_4, %c1_5] : memref<2x2xf32, #tpu.memory_space<smem>>
    %5 = arith.addf %3, %4 : f32
    %c0_6 = arith.constant 0 : index
    %c0_7 = arith.constant 0 : index
    %6 = memref.load %arg6[%c0_6, %c0_7] : memref<1x1xf32, #tpu.memory_space<smem>>
    %7 = arith.mulf %2, %6 : f32
    %c0_8 = arith.constant 0 : index
    %c0_9 = arith.constant 0 : index
    %8 = memref.load %arg7[%c0_8, %c0_9] : memref<1x1xf32, #tpu.memory_space<smem>>
    %9 = arith.mulf %5, %8 : f32
    %c0_10 = arith.constant 0 : index
    %c0_11 = arith.constant 0 : index
    %10 = vector.load %arg0[%c0_10, %c0_11] : memref<16x4xf32, #tpu.memory_space<vmem>>, vector<16x4xf32>
    %11 = vector.extract_strided_slice %10 {offsets = [0, 0], sizes = [16, 1], strides = [1, 1]} : vector<16x4xf32> to vector<16x1xf32>
    %c0_12 = arith.constant 0 : index
    %c0_13 = arith.constant 0 : index
    %12 = memref.load %arg5[%c0_12, %c0_13] : memref<4x1xf32, #tpu.memory_space<smem>>
    %13 = vector.broadcast %12 : f32 to vector<16x1xf32>
    %14 = arith.mulf %11, %13 : vector<16x1xf32>
    %15 = vector.extract_strided_slice %10 {offsets = [0, 1], sizes = [16, 1], strides = [1, 1]} : vector<16x4xf32> to vector<16x1xf32>
    %c1_14 = arith.constant 1 : index
    %c0_15 = arith.constant 0 : index
    %16 = memref.load %arg5[%c1_14, %c0_15] : memref<4x1xf32, #tpu.memory_space<smem>>
    %17 = vector.broadcast %16 : f32 to vector<16x1xf32>
    %18 = arith.mulf %15, %17 : vector<16x1xf32>
    %19 = arith.addf %14, %18 : vector<16x1xf32>
    %20 = vector.extract_strided_slice %10 {offsets = [0, 2], sizes = [16, 1], strides = [1, 1]} : vector<16x4xf32> to vector<16x1xf32>
    %c2 = arith.constant 2 : index
    %c0_16 = arith.constant 0 : index
    %21 = memref.load %arg5[%c2, %c0_16] : memref<4x1xf32, #tpu.memory_space<smem>>
    %22 = vector.broadcast %21 : f32 to vector<16x1xf32>
    %23 = arith.mulf %20, %22 : vector<16x1xf32>
    %24 = arith.addf %19, %23 : vector<16x1xf32>
    %25 = vector.extract_strided_slice %10 {offsets = [0, 3], sizes = [16, 1], strides = [1, 1]} : vector<16x4xf32> to vector<16x1xf32>
    %c3 = arith.constant 3 : index
    %c0_17 = arith.constant 0 : index
    %26 = memref.load %arg5[%c3, %c0_17] : memref<4x1xf32, #tpu.memory_space<smem>>
    %27 = vector.broadcast %26 : f32 to vector<16x1xf32>
    %28 = arith.mulf %25, %27 : vector<16x1xf32>
    %29 = arith.addf %24, %28 : vector<16x1xf32>
    %c0_18 = arith.constant 0 : index
    %c0_19 = arith.constant 0 : index
    %30 = vector.load %arg1[%c0_18, %c0_19] : memref<32x8xf32, #tpu.memory_space<vmem>>, vector<32x8xf32>
    %31 = vector.extract_strided_slice %30 {offsets = [0, 0], sizes = [32, 1], strides = [1, 1]} : vector<32x8xf32> to vector<32x1xf32>
    %c0_20 = arith.constant 0 : index
    %c0_21 = arith.constant 0 : index
    %32 = memref.load %arg9[%c0_20, %c0_21] : memref<8x2xf32, #tpu.memory_space<smem>>
    %33 = vector.broadcast %32 : f32 to vector<32x1xf32>
    %34 = arith.mulf %31, %33 : vector<32x1xf32>
    %35 = vector.extract_strided_slice %30 {offsets = [0, 0], sizes = [32, 1], strides = [1, 1]} : vector<32x8xf32> to vector<32x1xf32>
    %c0_22 = arith.constant 0 : index
    %c1_23 = arith.constant 1 : index
    %36 = memref.load %arg9[%c0_22, %c1_23] : memref<8x2xf32, #tpu.memory_space<smem>>
    %37 = vector.broadcast %36 : f32 to vector<32x1xf32>
    %38 = arith.mulf %35, %37 : vector<32x1xf32>
    %39 = vector.extract_strided_slice %30 {offsets = [0, 1], sizes = [32, 1], strides = [1, 1]} : vector<32x8xf32> to vector<32x1xf32>
    %c1_24 = arith.constant 1 : index
    %c0_25 = arith.constant 0 : index
    %40 = memref.load %arg9[%c1_24, %c0_25] : memref<8x2xf32, #tpu.memory_space<smem>>
    %41 = vector.broadcast %40 : f32 to vector<32x1xf32>
    %42 = arith.mulf %39, %41 : vector<32x1xf32>
    %43 = arith.addf %34, %42 : vector<32x1xf32>
    %c1_26 = arith.constant 1 : index
    %c1_27 = arith.constant 1 : index
    %44 = memref.load %arg9[%c1_26, %c1_27] : memref<8x2xf32, #tpu.memory_space<smem>>
    %45 = vector.broadcast %44 : f32 to vector<32x1xf32>
    %46 = arith.mulf %39, %45 : vector<32x1xf32>
    %47 = arith.addf %38, %46 : vector<32x1xf32>
    %48 = vector.extract_strided_slice %30 {offsets = [0, 2], sizes = [32, 1], strides = [1, 1]} : vector<32x8xf32> to vector<32x1xf32>
    %c2_28 = arith.constant 2 : index
    %c0_29 = arith.constant 0 : index
    %49 = memref.load %arg9[%c2_28, %c0_29] : memref<8x2xf32, #tpu.memory_space<smem>>
    %50 = vector.broadcast %49 : f32 to vector<32x1xf32>
    %51 = arith.mulf %48, %50 : vector<32x1xf32>
    %52 = arith.addf %43, %51 : vector<32x1xf32>
    %c2_30 = arith.constant 2 : index
    %c1_31 = arith.constant 1 : index
    %53 = memref.load %arg9[%c2_30, %c1_31] : memref<8x2xf32, #tpu.memory_space<smem>>
    %54 = vector.broadcast %53 : f32 to vector<32x1xf32>
    %55 = arith.mulf %48, %54 : vector<32x1xf32>
    %56 = arith.addf %47, %55 : vector<32x1xf32>
    %57 = vector.extract_strided_slice %30 {offsets = [0, 3], sizes = [32, 1], strides = [1, 1]} : vector<32x8xf32> to vector<32x1xf32>
    %c3_32 = arith.constant 3 : index
    %c0_33 = arith.constant 0 : index
    %58 = memref.load %arg9[%c3_32, %c0_33] : memref<8x2xf32, #tpu.memory_space<smem>>
    %59 = vector.broadcast %58 : f32 to vector<32x1xf32>
    %60 = arith.mulf %57, %59 : vector<32x1xf32>
    %61 = arith.addf %52, %60 : vector<32x1xf32>
    %c3_34 = arith.constant 3 : index
    %c1_35 = arith.constant 1 : index
    %62 = memref.load %arg9[%c3_34, %c1_35] : memref<8x2xf32, #tpu.memory_space<smem>>
    %63 = vector.broadcast %62 : f32 to vector<32x1xf32>
    %64 = arith.mulf %57, %63 : vector<32x1xf32>
    %65 = arith.addf %56, %64 : vector<32x1xf32>
    %66 = vector.extract_strided_slice %30 {offsets = [0, 4], sizes = [32, 1], strides = [1, 1]} : vector<32x8xf32> to vector<32x1xf32>
    %c4 = arith.constant 4 : index
    %c0_36 = arith.constant 0 : index
    %67 = memref.load %arg9[%c4, %c0_36] : memref<8x2xf32, #tpu.memory_space<smem>>
    %68 = vector.broadcast %67 : f32 to vector<32x1xf32>
    %69 = arith.mulf %66, %68 : vector<32x1xf32>
    %70 = arith.addf %61, %69 : vector<32x1xf32>
    %c4_37 = arith.constant 4 : index
    %c1_38 = arith.constant 1 : index
    %71 = memref.load %arg9[%c4_37, %c1_38] : memref<8x2xf32, #tpu.memory_space<smem>>
    %72 = vector.broadcast %71 : f32 to vector<32x1xf32>
    %73 = arith.mulf %66, %72 : vector<32x1xf32>
    %74 = arith.addf %65, %73 : vector<32x1xf32>
    %75 = vector.extract_strided_slice %30 {offsets = [0, 5], sizes = [32, 1], strides = [1, 1]} : vector<32x8xf32> to vector<32x1xf32>
    %c5 = arith.constant 5 : index
    %c0_39 = arith.constant 0 : index
    %76 = memref.load %arg9[%c5, %c0_39] : memref<8x2xf32, #tpu.memory_space<smem>>
    %77 = vector.broadcast %76 : f32 to vector<32x1xf32>
    %78 = arith.mulf %75, %77 : vector<32x1xf32>
    %79 = arith.addf %70, %78 : vector<32x1xf32>
    %c5_40 = arith.constant 5 : index
    %c1_41 = arith.constant 1 : index
    %80 = memref.load %arg9[%c5_40, %c1_41] : memref<8x2xf32, #tpu.memory_space<smem>>
    %81 = vector.broadcast %80 : f32 to vector<32x1xf32>
    %82 = arith.mulf %75, %81 : vector<32x1xf32>
    %83 = arith.addf %74, %82 : vector<32x1xf32>
    %84 = vector.extract_strided_slice %30 {offsets = [0, 6], sizes = [32, 1], strides = [1, 1]} : vector<32x8xf32> to vector<32x1xf32>
    %c6 = arith.constant 6 : index
    %c0_42 = arith.constant 0 : index
    %85 = memref.load %arg9[%c6, %c0_42] : memref<8x2xf32, #tpu.memory_space<smem>>
    %86 = vector.broadcast %85 : f32 to vector<32x1xf32>
    %87 = arith.mulf %84, %86 : vector<32x1xf32>
    %88 = arith.addf %79, %87 : vector<32x1xf32>
    %c6_43 = arith.constant 6 : index
    %c1_44 = arith.constant 1 : index
    %89 = memref.load %arg9[%c6_43, %c1_44] : memref<8x2xf32, #tpu.memory_space<smem>>
    %90 = vector.broadcast %89 : f32 to vector<32x1xf32>
    %91 = arith.mulf %84, %90 : vector<32x1xf32>
    %92 = arith.addf %83, %91 : vector<32x1xf32>
    %93 = vector.extract_strided_slice %30 {offsets = [0, 7], sizes = [32, 1], strides = [1, 1]} : vector<32x8xf32> to vector<32x1xf32>
    %c7 = arith.constant 7 : index
    %c0_45 = arith.constant 0 : index
    %94 = memref.load %arg9[%c7, %c0_45] : memref<8x2xf32, #tpu.memory_space<smem>>
    %95 = vector.broadcast %94 : f32 to vector<32x1xf32>
    %96 = arith.mulf %93, %95 : vector<32x1xf32>
    %97 = arith.addf %88, %96 : vector<32x1xf32>
    %c7_46 = arith.constant 7 : index
    %c1_47 = arith.constant 1 : index
    %98 = memref.load %arg9[%c7_46, %c1_47] : memref<8x2xf32, #tpu.memory_space<smem>>
    %99 = vector.broadcast %98 : f32 to vector<32x1xf32>
    %100 = arith.mulf %93, %99 : vector<32x1xf32>
    %101 = arith.addf %92, %100 : vector<32x1xf32>
    %102 = arith.addf %97, %101 : vector<32x1xf32>
    %103 = tpu.iota {dimensions = array<i32: 1>} : vector<32x16xi32>
    %c0_48 = arith.constant 0 : index
    %c0_49 = arith.constant 0 : index
    %104 = vector.load %arg2[%c0_48, %c0_49] : memref<32x1xi32, #tpu.memory_space<vmem>>, vector<32x1xi32>
    %105 = vector.broadcast %104 : vector<32x1xi32> to vector<32x16xi32>
    %106 = arith.cmpi eq, %105, %103 : vector<32x16xi32>
    %107 = arith.extui %106 : vector<32x16xi1> to vector<32x16xi32>
    %108 = arith.sitofp %107 : vector<32x16xi32> to vector<32x16xf32>
    %c0_50 = arith.constant 0 : index
    %c0_51 = arith.constant 0 : index
    %109 = vector.load %arg3[%c0_50, %c0_51] : memref<32x1xi32, #tpu.memory_space<vmem>>, vector<32x1xi32>
    %110 = vector.broadcast %109 : vector<32x1xi32> to vector<32x16xi32>
    %111 = arith.cmpi eq, %110, %103 : vector<32x16xi32>
    %112 = arith.extui %111 : vector<32x16xi1> to vector<32x16xi32>
    %113 = arith.sitofp %112 : vector<32x16xi32> to vector<32x16xf32>
    %114 = tpu.iota {dimensions = array<i32: 0>} : vector<16x32xi32>
    %c0_52 = arith.constant 0 : index
    %c0_53 = arith.constant 0 : index
    %115 = vector.load %arg4[%c0_52, %c0_53] : memref<1x32xi32, #tpu.memory_space<vmem>>, vector<1x32xi32>
    %116 = vector.broadcast %115 : vector<1x32xi32> to vector<16x32xi32>
    %117 = arith.cmpi eq, %116, %114 : vector<16x32xi32>
    %118 = arith.extui %117 : vector<16x32xi1> to vector<16x32xi32>
    %119 = arith.sitofp %118 : vector<16x32xi32> to vector<16x32xf32>
    %120 = vector.broadcast %7 : f32 to vector<32x16xf32>
    %121 = arith.mulf %120, %108 : vector<32x16xf32>
    %122 = vector.broadcast %9 : f32 to vector<32x16xf32>
    %123 = arith.mulf %122, %113 : vector<32x16xf32>
    %124 = arith.addf %121, %123 : vector<32x16xf32>
    %cst = arith.constant dense<0.000000e+00> : vector<32x1xf32>
    %125 = tpu.matmul %124, %29, %cst {dimension_numbers = #tpu.dot_dimension_numbers<[1], [0], [0], [1], [0, 0, 1, 1], [], []>} : vector<32x16xf32>, vector<16x1xf32>, vector<32x1xf32> -> vector<32x1xf32>
    %126 = arith.addf %125, %102 : vector<32x1xf32>
    %cst_54 = arith.constant 0.000000e+00 : f32
    %127 = vector.broadcast %cst_54 : f32 to vector<32x1xf32>
    %128 = arith.cmpf ogt, %126, %127 : vector<32x1xf32>
    %cst_55 = arith.constant 2.000000e-01 : f32
    %129 = vector.broadcast %cst_55 : f32 to vector<32x1xf32>
    %130 = arith.mulf %129, %126 : vector<32x1xf32>
    %131 = arith.select %128, %126, %130 : vector<32x1xi1>, vector<32x1xf32>
    %132 = vector.broadcast %131 : vector<32x1xf32> to vector<32x16xf32>
    %133 = arith.mulf %132, %108 : vector<32x16xf32>
    %cst_56 = arith.constant dense<0.000000e+00> : vector<16x16xf32>
    %134 = tpu.matmul %119, %133, %cst_56 {dimension_numbers = #tpu.dot_dimension_numbers<[1], [0], [0], [1], [0, 0, 1, 1], [], []>} : vector<16x32xf32>, vector<32x16xf32>, vector<16x16xf32> -> vector<16x16xf32>
    %cst_57 = arith.constant dense<0.000000e+00> : vector<16x16xf32>
    %135 = tpu.matmul %119, %108, %cst_57 {dimension_numbers = #tpu.dot_dimension_numbers<[1], [0], [0], [1], [0, 0, 1, 1], [], []>} : vector<16x32xf32>, vector<32x16xf32>, vector<16x16xf32> -> vector<16x16xf32>
    %cst_58 = arith.constant 0.000000e+00 : f32
    %136 = vector.broadcast %cst_58 : f32 to vector<16x16xf32>
    %137 = arith.cmpf ogt, %135, %136 : vector<16x16xf32>
    %cst_59 = arith.constant -1.000000e+30 : f32
    %138 = vector.broadcast %cst_59 : f32 to vector<16x16xf32>
    %139 = arith.select %137, %134, %138 : vector<16x16xi1>, vector<16x16xf32>
    %cst_60 = arith.constant dense<0xFF800000> : vector<16xf32>
    %140 = vector.multi_reduction <maximumf>, %139, %cst_60 [1] : vector<16x16xf32> to vector<16xf32>
    %141 = vector.shape_cast %140 : vector<16xf32> to vector<16x1xf32>
    %142 = vector.broadcast %141 : vector<16x1xf32> to vector<16x16xf32>
    %143 = arith.subf %139, %142 : vector<16x16xf32>
    %144 = math.exp %143 : vector<16x16xf32>
    %cst_61 = arith.constant -1.000000e+29 : f32
    %145 = vector.broadcast %cst_61 : f32 to vector<16x16xf32>
    %146 = arith.cmpf ogt, %139, %145 : vector<16x16xf32>
    %cst_62 = arith.constant 0.000000e+00 : f32
    %147 = vector.broadcast %cst_62 : f32 to vector<16x16xf32>
    %148 = arith.select %146, %144, %147 : vector<16x16xi1>, vector<16x16xf32>
    %cst_63 = arith.constant dense<0.000000e+00> : vector<16xf32>
    %149 = vector.multi_reduction <add>, %148, %cst_63 [1] : vector<16x16xf32> to vector<16xf32>
    %150 = vector.shape_cast %149 : vector<16xf32> to vector<16x1xf32>
    %cst_64 = arith.constant 9.99999968E-21 : f32
    %151 = vector.broadcast %cst_64 : f32 to vector<16x1xf32>
    %152 = arith.maximumf %150, %151 : vector<16x1xf32>
    %153 = tpu.reciprocal %152 {approx = true} : vector<16x1xf32> -> vector<16x1xf32>
    %154 = vector.broadcast %153 : vector<16x1xf32> to vector<16x16xf32>
    %155 = arith.mulf %148, %154 : vector<16x16xf32>
    %cst_65 = arith.constant dense<0.000000e+00> : vector<16x1xf32>
    %156 = tpu.matmul %155, %29, %cst_65 {dimension_numbers = #tpu.dot_dimension_numbers<[1], [0], [0], [1], [0, 0, 1, 1], [], []>} : vector<16x16xf32>, vector<16x1xf32>, vector<16x1xf32> -> vector<16x1xf32>
    %cst_66 = arith.constant dense<0.000000e+00> : vector<32x16xf32>
    %157 = tpu.matmul %113, %155, %cst_66 {dimension_numbers = #tpu.dot_dimension_numbers<[1], [0], [0], [1], [0, 0, 1, 1], [], []>} : vector<32x16xf32>, vector<16x16xf32>, vector<32x16xf32> -> vector<32x16xf32>
    %158 = arith.mulf %157, %108 : vector<32x16xf32>
    %cst_67 = arith.constant dense<0.000000e+00> : vector<32xf32>
    %159 = vector.multi_reduction <add>, %158, %cst_67 [1] : vector<32x16xf32> to vector<32xf32>
    %160 = vector.shape_cast %159 : vector<32xf32> to vector<32x1xf32>
    %161 = tpu.iota {dimensions = array<i32: 1>} : vector<16x128xi32>
    %c0_i32 = arith.constant 0 : i32
    %162 = vector.broadcast %c0_i32 : i32 to vector<16x128xi32>
    %163 = arith.cmpi eq, %161, %162 : vector<16x128xi32>
    %cst_68 = arith.constant 0.000000e+00 : f32
    %164 = vector.shape_cast %156 : vector<16x1xf32> to vector<16x1xf32>
    %165 = vector.broadcast %164 : vector<16x1xf32> to vector<16x128xf32>
    %166 = vector.broadcast %cst_68 : f32 to vector<16x128xf32>
    %167 = arith.select %163, %165, %166 : vector<16x128xi1>, vector<16x128xf32>
    %c0_69 = arith.constant 0 : index
    %c0_70 = arith.constant 0 : index
    %168 = vector.load %arg10[%c0_69, %c0_70] : memref<16x128xf32, #tpu.memory_space<vmem>>, vector<16x128xf32>
    tpu.vector_store %arg10[%c0_69, %c0_70], %167 {strides = array<i32>} : memref<16x128xf32, #tpu.memory_space<vmem>>, vector<16x128xf32>,
    %169 = tpu.iota {dimensions = array<i32: 1>} : vector<32x128xi32>
    %c0_i32_71 = arith.constant 0 : i32
    %170 = vector.broadcast %c0_i32_71 : i32 to vector<32x128xi32>
    %171 = arith.cmpi eq, %169, %170 : vector<32x128xi32>
    %cst_72 = arith.constant 0.000000e+00 : f32
    %172 = vector.shape_cast %160 : vector<32x1xf32> to vector<32x1xf32>
    %173 = vector.broadcast %172 : vector<32x1xf32> to vector<32x128xf32>
    %174 = vector.broadcast %cst_72 : f32 to vector<32x128xf32>
    %175 = arith.select %171, %173, %174 : vector<32x128xi1>, vector<32x128xf32>
    %c1_i32 = arith.constant 1 : i32
    %176 = vector.broadcast %c1_i32 : i32 to vector<32x128xi32>
    %177 = arith.cmpi eq, %169, %176 : vector<32x128xi32>
    %178 = vector.shape_cast %97 : vector<32x1xf32> to vector<32x1xf32>
    %179 = vector.broadcast %178 : vector<32x1xf32> to vector<32x128xf32>
    %180 = arith.select %177, %179, %175 : vector<32x128xi1>, vector<32x128xf32>
    %c2_i32 = arith.constant 2 : i32
    %181 = vector.broadcast %c2_i32 : i32 to vector<32x128xi32>
    %182 = arith.cmpi eq, %169, %181 : vector<32x128xi32>
    %183 = vector.shape_cast %101 : vector<32x1xf32> to vector<32x1xf32>
    %184 = vector.broadcast %183 : vector<32x1xf32> to vector<32x128xf32>
    %185 = arith.select %182, %184, %180 : vector<32x128xi1>, vector<32x128xf32>
    %c0_73 = arith.constant 0 : index
    %c0_74 = arith.constant 0 : index
    %186 = vector.load %arg11[%c0_73, %c0_74] : memref<32x128xf32, #tpu.memory_space<vmem>>, vector<32x128xf32>
    tpu.vector_store %arg11[%c0_73, %c0_74], %185 {strides = array<i32>} : memref<32x128xf32, #tpu.memory_space<vmem>>, vector<32x128xf32>,
    return
  }
}

</mosaic_0001>

<llo_original>
// kernel: tpu_custom_call.1
$region0: #{tpu_custom_call.1}
  #allocation0 [shape = 'u32[]', space=smem, size = 0x4, offset = 0x4, fixed_abs, tag = 'smem constant byte address 0x4 - core index']
  #allocation1 [shape = 'u32[144,128]{1,0:T(1,128)}', space=vmem, size = 0x12000, scoped, tag = 'internal scratch']
  #allocation2 [shape = 'f32[1,1]{1,0:T(1,128)S(6)}', space=smem, size = 0x200, scoped, tag = 'scoped memory for tpu_custom_call.1']
  #allocation3 [shape = 'f32[1,1]{1,0:T(1,128)S(6)}', space=smem, size = 0x200, scoped, tag = 'scoped memory for tpu_custom_call.1']
  %s0 = inlined_call_operand.vmem [shape: f32[16,4], index: 0, kind: input, shape index: {}]
  %s1 = inlined_call_operand.vmem [shape: f32[32,8], index: 1, kind: input, shape index: {}]
  %s2 = inlined_call_operand.vmem [shape: s32[32,1], index: 2, kind: input, shape index: {}]
  %s3 = inlined_call_operand.vmem [shape: s32[32,1], index: 3, kind: input, shape index: {}]
  %s4 = inlined_call_operand.vmem [shape: s32[1,32], index: 4, kind: input, shape index: {}]
  %s5 = inlined_call_operand.vmem [shape: f32[4,1], index: 5, kind: input, shape index: {}]
  %s6 = inlined_call_operand.<no memory space> [shape: f32[1,1], index: 6, kind: input, shape index: {}]
  %s7 = inlined_call_operand.<no memory space> [shape: f32[1,1], index: 7, kind: input, shape index: {}]
  %s8 = inlined_call_operand.vmem [shape: f32[2,2], index: 8, kind: input, shape index: {}]
  %s9 = inlined_call_operand.vmem [shape: f32[8,2], index: 9, kind: input, shape index: {}]
  %s10 = inlined_call_operand.hbm [shape: f32[16,128], index: 10, kind: output, shape index: {0}]
  %s11 = inlined_call_operand.hbm [shape: f32[32,128], index: 11, kind: output, shape index: {1}]
  %12 = xla_tuple %s10, %s11
  %s13 = sld [smem:[#allocation0]]
  $region70: #{tpu_custom_call.1} parent=0
    _
  %s15 = ssub.s32 1, %s13
  %s16 = scalar_select 0, %s15, %s13
  %17 = sst [smem:[#allocation2]] %s6
  %18 = sst [smem:[#allocation3]] %s7
  $region1: #{tpu_custom_call.1} parent=0
    #allocation4 [shape = 'u8[2048]{0}', space=smem, size = 0x800, scoped, tag = 'input window, operand 5, single buffered']
    #allocation5 [shape = 's32[1]{0}', space=sflag, size = 0x4, scoped, tag = 'scoped memory for tpu_custom_call.1']
    #allocation6 [shape = 's32[1]{0}', space=sflag, size = 0x4, scoped, tag = 'scoped memory for tpu_custom_call.1']
    #allocation7 [shape = 'u8[1024]{0}', space=smem, size = 0x400, scoped, tag = 'input window, operand 8, single buffered']
    #allocation8 [shape = 's32[1]{0}', space=sflag, size = 0x4, scoped, tag = 'scoped memory for tpu_custom_call.1']
    #allocation9 [shape = 'u8[4096]{0}', space=smem, size = 0x1000, scoped, tag = 'input window, operand 9, single buffered']
    #allocation10 [shape = 'u8[8192]{0}', space=vmem, size = 0x2000, scoped, tag = 'output window, operand 0, single buffered']
    #allocation11 [shape = 'u8[16384]{0}', space=vmem, size = 0x4000, scoped, tag = 'output window, operand 1, single buffered']
    #allocation12 [shape = 's32[1]{0}', space=sflag, size = 0x4, scoped, tag = 'scoped memory for tpu_custom_call.1']
    %19 = vsyncpa [#allocation6], 0
    %20 = vsyncpa [#allocation8], 0
    %21 = vsyncpa [#allocation5], 0
    %22 = vsyncpa [#allocation12], 0
    // Predicated region
    $region2: #{tpu_custom_call.1} parent=1 // pred_check
      _
    $region3: #{tpu_custom_call.1} parent=1 // pred_check_branch
      %24 = sbr.rel (0) target = $region5
    $region4: #{tpu_custom_call.1} parent=1 // pred_region
      _
    $region5: #{tpu_custom_call.1} parent=1 // pred_fallthru
      _
    // Predicated region
    $region6: #{tpu_custom_call.1} parent=1 // pred_check
      _
    $region7: #{tpu_custom_call.1} parent=1 // pred_check_branch
      %26 = sbr.rel (0) target = $region9
    $region8: #{tpu_custom_call.1} parent=1 // pred_region
      _
    $region9: #{tpu_custom_call.1} parent=1 // pred_fallthru
      _
    // Predicated region
    $region10: #{tpu_custom_call.1} parent=1 // pred_check
      _
    $region11: #{tpu_custom_call.1} parent=1 // pred_check_branch
      %28 = sbr.rel (0) target = $region13
    $region12: #{tpu_custom_call.1} parent=1 // pred_region
      _
    $region13: #{tpu_custom_call.1} parent=1 // pred_fallthru
      _
    // Predicated region
    $region14: #{tpu_custom_call.1} parent=1 // pred_check
      _
    $region15: #{tpu_custom_call.1} parent=1 // pred_check_branch
      %30 = sbr.rel (0) target = $region17
    $region16: #{tpu_custom_call.1} parent=1 // pred_region
      _
    $region17: #{tpu_custom_call.1} parent=1 // pred_fallthru
      _
    // Predicated region
    $region18: #{tpu_custom_call.1} parent=1 // pred_check
      _
    $region19: #{tpu_custom_call.1} parent=1 // pred_check_branch
      %32 = sbr.rel (0) target = $region21
    $region20: #{tpu_custom_call.1} parent=1 // pred_region
      _
    $region21: #{tpu_custom_call.1} parent=1 // pred_fallthru
      _
    // Predicated region
    $region22: #{tpu_custom_call.1} parent=1 // pred_check
      _
    $region23: #{tpu_custom_call.1} parent=1 // pred_check_branch
      %34 = sbr.rel (0) target = $region25
    $region24: #{tpu_custom_call.1} parent=1 // pred_region
      %s36 = ssub.s32 64, 64
      %37 = vsyncadd [#allocation6], %s36
      %s39 = sshll.u32 %s5, 4
      %s40 = int_to_ptr.vmem [resolvable:$true] %s39
      %42 = dma.vmem_to_smem %s40, 64, [#allocation4], [#allocation6]
    $region25: #{tpu_custom_call.1} parent=1 // pred_fallthru
      _
    // Predicated region
    $region26: #{tpu_custom_call.1} parent=1 // pred_check
      _
    $region27: #{tpu_custom_call.1} parent=1 // pred_check_branch
      %44 = sbr.rel (0) target = $region29
    $region28: #{tpu_custom_call.1} parent=1 // pred_region
      _
    $region29: #{tpu_custom_call.1} parent=1 // pred_fallthru
      _
    // Predicated region
    $region30: #{tpu_custom_call.1} parent=1 // pred_check
      _
    $region31: #{tpu_custom_call.1} parent=1 // pred_check_branch
      %46 = sbr.rel (0) target = $region33
    $region32: #{tpu_custom_call.1} parent=1 // pred_region
      _
    $region33: #{tpu_custom_call.1} parent=1 // pred_fallthru
      _
    // Predicated region
    $region34: #{tpu_custom_call.1} parent=1 // pred_check
      _
    $region35: #{tpu_custom_call.1} parent=1 // pred_check_branch
      %48 = sbr.rel (0) target = $region37
    $region36: #{tpu_custom_call.1} parent=1 // pred_region
      %s50 = ssub.s32 32, 32
      %51 = vsyncadd [#allocation8], %s50
      %s53 = sshll.u32 %s8, 4
      %s54 = int_to_ptr.vmem [resolvable:$true] %s53
      %56 = dma.vmem_to_smem %s54, 32, [#allocation7], [#allocation8]
    $region37: #{tpu_custom_call.1} parent=1 // pred_fallthru
      _
    // Predicated region
    $region38: #{tpu_custom_call.1} parent=1 // pred_check
      _
    $region39: #{tpu_custom_call.1} parent=1 // pred_check_branch
      %58 = sbr.rel (0) target = $region41
    $region40: #{tpu_custom_call.1} parent=1 // pred_region
      %s60 = ssub.s32 128, 128
      %61 = vsyncadd [#allocation8], %s60
      %s63 = sshll.u32 %s9, 4
      %s64 = int_to_ptr.vmem [resolvable:$true] %s63
      %66 = dma.vmem_to_smem %s64, 128, [#allocation9], [#allocation8]
    $region41: #{tpu_custom_call.1} parent=1 // pred_fallthru
      _
    // Predicated region
    $region42: #{tpu_custom_call.1} parent=1 // pred_check
      _
    $region43: #{tpu_custom_call.1} parent=1 // pred_check_branch
      %68 = sbr.rel (0) target = $region45
    $region44: #{tpu_custom_call.1} parent=1 // pred_region
      %69 = dma.done [#allocation6], 64
    $region45: #{tpu_custom_call.1} parent=1 // pred_fallthru
      _
    // Predicated region
    $region46: #{tpu_custom_call.1} parent=1 // pred_check
      _
    $region47: #{tpu_custom_call.1} parent=1 // pred_check_branch
      %71 = sbr.rel (0) target = $region49
    $region48: #{tpu_custom_call.1} parent=1 // pred_region
      %72 = dma.done [#allocation8], 32
    $region49: #{tpu_custom_call.1} parent=1 // pred_fallthru
      _
    // Predicated region
    $region50: #{tpu_custom_call.1} parent=1 // pred_check
      _
    $region51: #{tpu_custom_call.1} parent=1 // pred_check_branch
      %74 = sbr.rel (0) target = $region53
    $region52: #{tpu_custom_call.1} parent=1 // pred_region
      %75 = dma.done [#allocation8], 128
    $region53: #{tpu_custom_call.1} parent=1 // pred_fallthru
      _
    %76 = sfence
    %s77 = sld [smem:[#allocation7]]
    %s78 = sld [smem:[#allocation7 + $0x1]]
    %s79 = sadd.f32 %s77, %s78
    %s80 = sld [smem:[#allocation7 + $0x80]]
    %s81 = sld [smem:[#allocation7 + $0x81]]
    %s82 = sadd.f32 %s80, %s81
    %s83 = sld [smem:[#allocation2]]
    %s84 = smul.f32 %s79, %s83
    %s85 = sld [smem:[#allocation3]]
    %s86 = smul.f32 %s82, %s85
    %v87 = vld [vmem:[%s0] sm:$0xff]
    %v88 = vld [vmem:[%s0 + $0x8] sm:$0xff]
    %s89 = sld [smem:[#allocation4]]
    %v90 = vstv %s89
    %v91 = vmul.f32 %v87, %v90
    %v92 = vmul.f32 %v88, %v90
    %s93 = sld [smem:[#allocation4 + $0x80]]
    %v94 = vstv %s93
    %v95 = vmul.f32 %v87, %v94
    %v96 = vmul.f32 %v88, %v94
    %99 = vrot.lane.b32.xlu0 %v95, 127
    %v100 = vpop.permute.xlu0 %99
    %101 = vrot.lane.b32.xlu0 %v96, 127
    %v102 = vpop.permute.xlu0 %101
    %v105 = vadd.f32 %v91, %v100
    %v106 = vadd.f32 %v92, %v102
    %s107 = sld [smem:[#allocation4 + $0x100]]
    %v108 = vstv %s107
    %v109 = vmul.f32 %v87, %v108
    %v110 = vmul.f32 %v88, %v108
    %113 = vrot.lane.b32.xlu0 %v109, 126
    %v114 = vpop.permute.xlu0 %113
    %115 = vrot.lane.b32.xlu0 %v110, 126
    %v116 = vpop.permute.xlu0 %115
    %v119 = vadd.f32 %v105, %v114
    %v120 = vadd.f32 %v106, %v116
    %s121 = sld [smem:[#allocation4 + $0x180]]
    %v122 = vstv %s121
    %v123 = vmul.f32 %v87, %v122
    %v124 = vmul.f32 %v88, %v122
    %127 = vrot.lane.b32.xlu0 %v123, 125
    %v128 = vpop.permute.xlu0 %127
    %129 = vrot.lane.b32.xlu0 %v124, 125
    %v130 = vpop.permute.xlu0 %129
    %v133 = vadd.f32 %v119, %v128
    %v134 = vadd.f32 %v120, %v130
    %v135 = vld [vmem:[%s1] sm:$0xff]
    %v136 = vld [vmem:[%s1 + $0x8] sm:$0xff]
    %v137 = vld [vmem:[%s1 + $0x10] sm:$0xff]
    %v138 = vld [vmem:[%s1 + $0x18] sm:$0xff]
    %s139 = sld [smem:[#allocation9]]
    %v140 = vstv %s139
    %v141 = vmul.f32 %v135, %v140
    %v142 = vmul.f32 %v136, %v140
    %v143 = vmul.f32 %v137, %v140
    %v144 = vmul.f32 %v138, %v140
    %s145 = sld [smem:[#allocation9 + $0x1]]
    %v146 = vstv %s145
    %v147 = vmul.f32 %v135, %v146
    %v148 = vmul.f32 %v136, %v146
    %v149 = vmul.f32 %v137, %v146
    %v150 = vmul.f32 %v138, %v146
    %s151 = sld [smem:[#allocation9 + $0x80]]
    %v152 = vstv %s151
    %v153 = vmul.f32 %v135, %v152
    %v154 = vmul.f32 %v136, %v152
    %v155 = vmul.f32 %v137, %v152
    %v156 = vmul.f32 %v138, %v152
    %161 = vrot.lane.b32.xlu0 %v153, 127
    %v162 = vpop.permute.xlu0 %161
    %163 = vrot.lane.b32.xlu0 %v154, 127
    %v164 = vpop.permute.xlu0 %163
    %165 = vrot.lane.b32.xlu0 %v155, 127
    %v166 = vpop.permute.xlu0 %165
    %167 = vrot.lane.b32.xlu0 %v156, 127
    %v168 = vpop.permute.xlu0 %167
    %v173 = vadd.f32 %v141, %v162
    %v174 = vadd.f32 %v142, %v164
    %v175 = vadd.f32 %v143, %v166
    %v176 = vadd.f32 %v144, %v168
    %s177 = sld [smem:[#allocation9 + $0x81]]
    %v178 = vstv %s177
    %v179 = vmul.f32 %v135, %v178
    %v180 = vmul.f32 %v136, %v178
    %v181 = vmul.f32 %v137, %v178
    %v182 = vmul.f32 %v138, %v178
    %187 = vrot.lane.b32.xlu0 %v179, 127
    %v188 = vpop.permute.xlu0 %187
    %189 = vrot.lane.b32.xlu0 %v180, 127
    %v190 = vpop.permute.xlu0 %189
    %191 = vrot.lane.b32.xlu0 %v181, 127
    %v192 = vpop.permute.xlu0 %191
    %193 = vrot.lane.b32.xlu0 %v182, 127
    %v194 = vpop.permute.xlu0 %193
    %v199 = vadd.f32 %v147, %v188
    %v200 = vadd.f32 %v148, %v190
    %v201 = vadd.f32 %v149, %v192
    %v202 = vadd.f32 %v150, %v194
    %s203 = sld [smem:[#allocation9 + $0x100]]
    %v204 = vstv %s203
    %v205 = vmul.f32 %v135, %v204
    %v206 = vmul.f32 %v136, %v204
    %v207 = vmul.f32 %v137, %v204
    %v208 = vmul.f32 %v138, %v204
    %213 = vrot.lane.b32.xlu0 %v205, 126
    %v214 = vpop.permute.xlu0 %213
    %215 = vrot.lane.b32.xlu0 %v206, 126
    %v216 = vpop.permute.xlu0 %215
    %217 = vrot.lane.b32.xlu0 %v207, 126
    %v218 = vpop.permute.xlu0 %217
    %219 = vrot.lane.b32.xlu0 %v208, 126
    %v220 = vpop.permute.xlu0 %219
    %v225 = vadd.f32 %v173, %v214
    %v226 = vadd.f32 %v174, %v216
    %v227 = vadd.f32 %v175, %v218
    %v228 = vadd.f32 %v176, %v220
    %s229 = sld [smem:[#allocation9 + $0x101]]
    %v230 = vstv %s229
    %v231 = vmul.f32 %v135, %v230
    %v232 = vmul.f32 %v136, %v230
    %v233 = vmul.f32 %v137, %v230
    %v234 = vmul.f32 %v138, %v230
    %239 = vrot.lane.b32.xlu0 %v231, 126
    %v240 = vpop.permute.xlu0 %239
    %241 = vrot.lane.b32.xlu0 %v232, 126
    %v242 = vpop.permute.xlu0 %241
    %243 = vrot.lane.b32.xlu0 %v233, 126
    %v244 = vpop.permute.xlu0 %243
    %245 = vrot.lane.b32.xlu0 %v234, 126
    %v246 = vpop.permute.xlu0 %245
    %v251 = vadd.f32 %v199, %v240
    %v252 = vadd.f32 %v200, %v242
    %v253 = vadd.f32 %v201, %v244
    %v254 = vadd.f32 %v202, %v246
    %s255 = sld [smem:[#allocation9 + $0x180]]
    %v256 = vstv %s255
    %v257 = vmul.f32 %v135, %v256
    %v258 = vmul.f32 %v136, %v256
    %v259 = vmul.f32 %v137, %v256
    %v260 = vmul.f32 %v138, %v256
    %265 = vrot.lane.b32.xlu0 %v257, 125
    %v266 = vpop.permute.xlu0 %265
    %267 = vrot.lane.b32.xlu0 %v258, 125
    %v268 = vpop.permute.xlu0 %267
    %269 = vrot.lane.b32.xlu0 %v259, 125
    %v270 = vpop.permute.xlu0 %269
    %271 = vrot.lane.b32.xlu0 %v260, 125
    %v272 = vpop.permute.xlu0 %271
    %v277 = vadd.f32 %v225, %v266
    %v278 = vadd.f32 %v226, %v268
    %v279 = vadd.f32 %v227, %v270
    %v280 = vadd.f32 %v228, %v272
    %s281 = sld [smem:[#allocation9 + $0x181]]
    %v282 = vstv %s281
    %v283 = vmul.f32 %v135, %v282
    %v284 = vmul.f32 %v136, %v282
    %v285 = vmul.f32 %v137, %v282
    %v286 = vmul.f32 %v138, %v282
    %291 = vrot.lane.b32.xlu0 %v283, 125
    %v292 = vpop.permute.xlu0 %291
    %293 = vrot.lane.b32.xlu0 %v284, 125
    %v294 = vpop.permute.xlu0 %293
    %295 = vrot.lane.b32.xlu0 %v285, 125
    %v296 = vpop.permute.xlu0 %295
    %297 = vrot.lane.b32.xlu0 %v286, 125
    %v298 = vpop.permute.xlu0 %297
    %v303 = vadd.f32 %v251, %v292
    %v304 = vadd.f32 %v252, %v294
    %v305 = vadd.f32 %v253, %v296
    %v306 = vadd.f32 %v254, %v298
    %s307 = sld [smem:[#allocation9 + $0x200]]
    %v308 = vstv %s307
    %v309 = vmul.f32 %v135, %v308
    %v310 = vmul.f32 %v136, %v308
    %v311 = vmul.f32 %v137, %v308
    %v312 = vmul.f32 %v138, %v308
    %317 = vrot.lane.b32.xlu0 %v309, 124
    %v318 = vpop.permute.xlu0 %317
    %319 = vrot.lane.b32.xlu0 %v310, 124
    %v320 = vpop.permute.xlu0 %319
    %321 = vrot.lane.b32.xlu0 %v311, 124
    %v322 = vpop.permute.xlu0 %321
    %323 = vrot.lane.b32.xlu0 %v312, 124
    %v324 = vpop.permute.xlu0 %323
    %v329 = vadd.f32 %v277, %v318
    %v330 = vadd.f32 %v278, %v320
    %v331 = vadd.f32 %v279, %v322
    %v332 = vadd.f32 %v280, %v324
    %s333 = sld [smem:[#allocation9 + $0x201]]
    %v334 = vstv %s333
    %v335 = vmul.f32 %v135, %v334
    %v336 = vmul.f32 %v136, %v334
    %v337 = vmul.f32 %v137, %v334
    %v338 = vmul.f32 %v138, %v334
    %343 = vrot.lane.b32.xlu0 %v335, 124
    %v344 = vpop.permute.xlu0 %343
    %345 = vrot.lane.b32.xlu0 %v336, 124
    %v346 = vpop.permute.xlu0 %345
    %347 = vrot.lane.b32.xlu0 %v337, 124
    %v348 = vpop.permute.xlu0 %347
    %349 = vrot.lane.b32.xlu0 %v338, 124
    %v350 = vpop.permute.xlu0 %349
    %v355 = vadd.f32 %v303, %v344
    %v356 = vadd.f32 %v304, %v346
    %v357 = vadd.f32 %v305, %v348
    %v358 = vadd.f32 %v306, %v350
    %s359 = sld [smem:[#allocation9 + $0x280]]
    %v360 = vstv %s359
    %v361 = vmul.f32 %v135, %v360
    %v362 = vmul.f32 %v136, %v360
    %v363 = vmul.f32 %v137, %v360
    %v364 = vmul.f32 %v138, %v360
    %369 = vrot.lane.b32.xlu0 %v361, 123
    %v370 = vpop.permute.xlu0 %369
    %371 = vrot.lane.b32.xlu0 %v362, 123
    %v372 = vpop.permute.xlu0 %371
    %373 = vrot.lane.b32.xlu0 %v363, 123
    %v374 = vpop.permute.xlu0 %373
    %375 = vrot.lane.b32.xlu0 %v364, 123
    %v376 = vpop.permute.xlu0 %375
    %v381 = vadd.f32 %v329, %v370
    %v382 = vadd.f32 %v330, %v372
    %v383 = vadd.f32 %v331, %v374
    %v384 = vadd.f32 %v332, %v376
    %s385 = sld [smem:[#allocation9 + $0x281]]
    %v386 = vstv %s385
    %v387 = vmul.f32 %v135, %v386
    %v388 = vmul.f32 %v136, %v386
    %v389 = vmul.f32 %v137, %v386
    %v390 = vmul.f32 %v138, %v386
    %395 = vrot.lane.b32.xlu0 %v387, 123
    %v396 = vpop.permute.xlu0 %395
    %397 = vrot.lane.b32.xlu0 %v388, 123
    %v398 = vpop.permute.xlu0 %397
    %399 = vrot.lane.b32.xlu0 %v389, 123
    %v400 = vpop.permute.xlu0 %399
    %401 = vrot.lane.b32.xlu0 %v390, 123
    %v402 = vpop.permute.xlu0 %401
    %v407 = vadd.f32 %v355, %v396
    %v408 = vadd.f32 %v356, %v398
    %v409 = vadd.f32 %v357, %v400
    %v410 = vadd.f32 %v358, %v402
    %s411 = sld [smem:[#allocation9 + $0x300]]
    %v412 = vstv %s411
    %v413 = vmul.f32 %v135, %v412
    %v414 = vmul.f32 %v136, %v412
    %v415 = vmul.f32 %v137, %v412
    %v416 = vmul.f32 %v138, %v412
    %421 = vrot.lane.b32.xlu0 %v413, 122
    %v422 = vpop.permute.xlu0 %421
    %423 = vrot.lane.b32.xlu0 %v414, 122
    %v424 = vpop.permute.xlu0 %423
    %425 = vrot.lane.b32.xlu0 %v415, 122
    %v426 = vpop.permute.xlu0 %425
    %427 = vrot.lane.b32.xlu0 %v416, 122
    %v428 = vpop.permute.xlu0 %427
    %v433 = vadd.f32 %v381, %v422
    %v434 = vadd.f32 %v382, %v424
    %v435 = vadd.f32 %v383, %v426
    %v436 = vadd.f32 %v384, %v428
    %s437 = sld [smem:[#allocation9 + $0x301]]
    %v438 = vstv %s437
    %v439 = vmul.f32 %v135, %v438
    %v440 = vmul.f32 %v136, %v438
    %v441 = vmul.f32 %v137, %v438
    %v442 = vmul.f32 %v138, %v438
    %447 = vrot.lane.b32.xlu0 %v439, 122
    %v448 = vpop.permute.xlu0 %447
    %449 = vrot.lane.b32.xlu0 %v440, 122
    %v450 = vpop.permute.xlu0 %449
    %451 = vrot.lane.b32.xlu0 %v441, 122
    %v452 = vpop.permute.xlu0 %451
    %453 = vrot.lane.b32.xlu0 %v442, 122
    %v454 = vpop.permute.xlu0 %453
    %v459 = vadd.f32 %v407, %v448
    %v460 = vadd.f32 %v408, %v450
    %v461 = vadd.f32 %v409, %v452
    %v462 = vadd.f32 %v410, %v454
    %s463 = sld [smem:[#allocation9 + $0x380]]
    %v464 = vstv %s463
    %v465 = vmul.f32 %v135, %v464
    %v466 = vmul.f32 %v136, %v464
    %v467 = vmul.f32 %v137, %v464
    %v468 = vmul.f32 %v138, %v464
    %473 = vrot.lane.b32.xlu0 %v465, 121
    %v474 = vpop.permute.xlu0 %473
    %475 = vrot.lane.b32.xlu0 %v466, 121
    %v476 = vpop.permute.xlu0 %475
    %477 = vrot.lane.b32.xlu0 %v467, 121
    %v478 = vpop.permute.xlu0 %477
    %479 = vrot.lane.b32.xlu0 %v468, 121
    %v480 = vpop.permute.xlu0 %479
    %v485 = vadd.f32 %v433, %v474
    %v486 = vadd.f32 %v434, %v476
    %v487 = vadd.f32 %v435, %v478
    %v488 = vadd.f32 %v436, %v480
    %s489 = sld [smem:[#allocation9 + $0x381]]
    %v490 = vstv %s489
    %v491 = vmul.f32 %v135, %v490
    %v492 = vmul.f32 %v136, %v490
    %v493 = vmul.f32 %v137, %v490
    %v494 = vmul.f32 %v138, %v490
    %499 = vrot.lane.b32.xlu0 %v491, 121
    %v500 = vpop.permute.xlu0 %499
    %501 = vrot.lane.b32.xlu0 %v492, 121
    %v502 = vpop.permute.xlu0 %501
    %503 = vrot.lane.b32.xlu0 %v493, 121
    %v504 = vpop.permute.xlu0 %503
    %505 = vrot.lane.b32.xlu0 %v494, 121
    %v506 = vpop.permute.xlu0 %505
    %v511 = vadd.f32 %v459, %v500
    %v512 = vadd.f32 %v460, %v502
    %v513 = vadd.f32 %v461, %v504
    %v514 = vadd.f32 %v462, %v506
    %v515 = vadd.f32 %v485, %v511
    %v516 = vadd.f32 %v486, %v512
    %v517 = vadd.f32 %v487, %v513
    %v518 = vadd.f32 %v488, %v514
    %v519 = vlaneseq
    %v520 = vand.u32 %v519, 127
    %v521 = vld [vmem:[%s2] sm:$0xff]
    %v522 = vld [vmem:[%s2 + $0x8] sm:$0xff]
    %v523 = vld [vmem:[%s2 + $0x10] sm:$0xff]
    %v524 = vld [vmem:[%s2 + $0x18] sm:$0xff]
    %525 = vset.pattern.permute.xlu0 0
    %526 = vperm.xlu0 %525, %v521
    %v527 = vpop.permute.xlu0 %526
    %528 = vset.pattern.permute.xlu0 0
    %529 = vperm.xlu0 %528, %v522
    %v530 = vpop.permute.xlu0 %529
    %531 = vset.pattern.permute.xlu0 0
    %532 = vperm.xlu0 %531, %v523
    %v533 = vpop.permute.xlu0 %532
    %534 = vset.pattern.permute.xlu0 0
    %535 = vperm.xlu0 %534, %v524
    %v536 = vpop.permute.xlu0 %535
    %vm537 = vcmp.eq.s32.totalorder %v527, %v520
    %vm538 = vcmp.eq.s32.totalorder %v530, %v520
    %vm539 = vcmp.eq.s32.totalorder %v533, %v520
    %vm540 = vcmp.eq.s32.totalorder %v536, %v520
    %v541 = vsel %vm537, 1, 0
    %v542 = vsel %vm538, 1, 0
    %v543 = vsel %vm539, 1, 0
    %v544 = vsel %vm540, 1, 0
    %v545 = vcvt.s32.f32 %v541
    %v546 = vcvt.s32.f32 %v542
    %v547 = vcvt.s32.f32 %v543
    %v548 = vcvt.s32.f32 %v544
    %v549 = vld [vmem:[%s3] sm:$0xff]
    %v550 = vld [vmem:[%s3 + $0x8] sm:$0xff]
    %v551 = vld [vmem:[%s3 + $0x10] sm:$0xff]
    %v552 = vld [vmem:[%s3 + $0x18] sm:$0xff]
    %553 = vset.pattern.permute.xlu0 0
    %554 = vperm.xlu0 %553, %v549
    %v555 = vpop.permute.xlu0 %554
    %556 = vset.pattern.permute.xlu0 0
    %557 = vperm.xlu0 %556, %v550
    %v558 = vpop.permute.xlu0 %557
    %559 = vset.pattern.permute.xlu0 0
    %560 = vperm.xlu0 %559, %v551
    %v561 = vpop.permute.xlu0 %560
    %562 = vset.pattern.permute.xlu0 0
    %563 = vperm.xlu0 %562, %v552
    %v564 = vpop.permute.xlu0 %563
    %vm565 = vcmp.eq.s32.totalorder %v555, %v520
    %vm566 = vcmp.eq.s32.totalorder %v558, %v520
    %vm567 = vcmp.eq.s32.totalorder %v561, %v520
    %vm568 = vcmp.eq.s32.totalorder %v564, %v520
    %v569 = vsel %vm565, 1, 0
    %v570 = vsel %vm566, 1, 0
    %v571 = vsel %vm567, 1, 0
    %v572 = vsel %vm568, 1, 0
    %v573 = vcvt.s32.f32 %v569
    %v574 = vcvt.s32.f32 %v570
    %v575 = vcvt.s32.f32 %v571
    %v576 = vcvt.s32.f32 %v572
    %v577 = vlaneseq
    %v578 = vshrl.u32 %v577, 7
    %v579 = vadd.s32 %v578, 8
    %v580 = vld [vmem:[%s4] sm:$0x1]
    %v581 = vlaneseq
    %v582 = vshrl.u32 %v581, 7
    %v583 = vsub.s32 0, %v582
    %v584 = vrot.slane %v580, %v583
    %vm585 = vcmp.eq.s32.totalorder %v584, %v578
    %vm586 = vcmp.eq.s32.totalorder %v584, %v579
    %v587 = vsel %vm585, 1, 0
    %v588 = vsel %vm586, 1, 0
    %v589 = vcvt.s32.f32 %v587
    %v590 = vcvt.s32.f32 %v588
    %v591 = vstv %s84
    %v592 = vmul.f32 %v591, %v545
    %v593 = vmul.f32 %v591, %v546
    %v594 = vmul.f32 %v591, %v547
    %v595 = vmul.f32 %v591, %v548
    %v596 = vstv %s86
    %v597 = vmul.f32 %v596, %v573
    %v598 = vmul.f32 %v596, %v574
    %v599 = vmul.f32 %v596, %v575
    %v600 = vmul.f32 %v596, %v576
    %v601 = vadd.f32 %v592, %v597
    %v602 = vadd.f32 %v593, %v598
    %v603 = vadd.f32 %v594, %v599
    %v604 = vadd.f32 %v595, %v600
    %vm605 = vcmask 130048
    %v607 = vsel %vm605, %v601, 0
    %v610 = vsel %vm605, %v602, 0
    %v613 = vsel %vm605, %v603, 0
    %v616 = vsel %vm605, %v604, 0
    %618 = vmatprep.subr.mxu0 0.0
    %619 = vmatpush1.msra.mxu0 %v133
    %620 = vmatprep.subr.mxu0 0.0
    %621 = vmatpush1.msra.mxu0 %v134
    %622 = vmatprep.subr.mxu0 0.0
    %623 = vmatpush1.msra.mxu0 0.0
    %624 = vmatprep.subr.mxu0 0.0
    %625 = vmatpush1.msra.mxu0 0.0
    %626 = vmatprep.subr.mxu0 0.0
    %627 = vmatpush1.msra.mxu0 0.0
    %628 = vmatprep.subr.mxu0 0.0
    %629 = vmatpush1.msra.mxu0 0.0
    %630 = vmatprep.subr.mxu0 0.0
    %631 = vmatpush1.msra.mxu0 0.0
    %632 = vmatprep.subr.mxu0 0.0
    %633 = vmatpush1.msra.mxu0 0.0
    %634 = vmatprep.subr.mxu0 0.0
    %635 = vmatpush1.msra.mxu0 0.0
    %636 = vmatprep.subr.mxu0 0.0
    %637 = vmatpush1.msra.mxu0 0.0
    %638 = vmatprep.subr.mxu0 0.0
    %639 = vmatpush1.msra.mxu0 0.0
    %640 = vmatprep.subr.mxu0 0.0
    %641 = vmatpush1.msra.mxu0 0.0
    %642 = vmatprep.subr.mxu0 0.0
    %643 = vmatpush1.msra.mxu0 0.0
    %644 = vmatprep.subr.mxu0 0.0
    %645 = vmatpush1.msra.mxu0 0.0
    %646 = vmatprep.subr.mxu0 0.0
    %647 = vmatpush1.msra.mxu0 0.0
    %648 = vmatprep.subr.mxu0 0.0
    %649 = vmatpush1.msra.mxu0 0.0
    %650 = vmatprep.subr.mxu0 0.0
    %651 = vmatpush1.msra.mxu0 0.0
    %652 = vmatprep.subr.mxu0 0.0
    %653 = vmatpush1.msra.mxu0 0.0
    %654 = vmatprep.subr.mxu0 0.0
    %655 = vmatpush1.msra.mxu0 0.0
    %656 = vmatprep.subr.mxu0 0.0
    %657 = vmatpush1.msra.mxu0 0.0
    %658 = vmatprep.subr.mxu0 0.0
    %659 = vmatpush1.msra.mxu0 0.0
    %660 = vmatprep.subr.mxu0 0.0
    %661 = vmatpush1.msra.mxu0 0.0
    %662 = vmatprep.subr.mxu0 0.0
    %663 = vmatpush1.msra.mxu0 0.0
    %664 = vmatprep.subr.mxu0 0.0
    %665 = vmatpush1.msra.mxu0 0.0
    %666 = vmatprep.subr.mxu0 0.0
    %667 = vmatpush1.msra.mxu0 0.0
    %668 = vmatprep.subr.mxu0 0.0
    %669 = vmatpush1.msra.mxu0 0.0
    %670 = vmatprep.subr.mxu0 0.0
    %671 = vmatpush1.msra.mxu0 0.0
    %672 = vmatprep.subr.mxu0 0.0
    %673 = vmatpush1.msra.mxu0 0.0
    %674 = vmatprep.subr.mxu0 0.0
    %675 = vmatpush1.msra.mxu0 0.0
    %676 = vmatprep.subr.mxu0 0.0
    %677 = vmatpush1.msra.mxu0 0.0
    %678 = vmatprep.subr.mxu0 0.0
    %679 = vmatpush1.msra.mxu0 0.0
    %680 = vmatprep.subr.mxu0 0.0
    %681 = vmatpush1.msra.mxu0 0.0
    %682 = vmatprep.mubr.f32.mxu0 0.0
    %683 = vmatmul.mubr.f32.gmra.mrb[0].mxu0 %v607
    %v684 = vpop.f32.mrb[0].mxu0
    %v685 = vadd.f32 %v515, %v684
    %v686 = vpop.f32.mrb[0].mxu0
    %687 = vmatprep.mubr.f32.mxu0 0.0
    %688 = vmatmul.mubr.f32.gmra.mrb[0].mxu0 %v610
    %v689 = vpop.f32.mrb[0].mxu0
    %v690 = vadd.f32 %v516, %v689
    %v691 = vpop.f32.mrb[0].mxu0
    %692 = vmatprep.mubr.f32.mxu0 0.0
    %693 = vmatmul.mubr.f32.gmra.mrb[0].mxu0 %v613
    %v694 = vpop.f32.mrb[0].mxu0
    %v695 = vadd.f32 %v517, %v694
    %v696 = vpop.f32.mrb[0].mxu0
    %697 = vmatprep.mubr.f32.mxu0 0.0
    %698 = vmatmul.mubr.f32.gmra.mrb[0].mxu0 %v616
    %v699 = vpop.f32.mrb[0].mxu0
    %v700 = vadd.f32 %v518, %v699
    %v701 = vpop.f32.mrb[0].mxu0
    %702 = vdwg.mxu0
    %vm703 = vcmp.gt.f32.partialorder %v685, 0.0
    %vm704 = vcmp.gt.f32.partialorder %v690, 0.0
    %vm705 = vcmp.gt.f32.partialorder %v695, 0.0
    %vm706 = vcmp.gt.f32.partialorder %v700, 0.0
    %v707 = vmul.f32 %v685, 0.2
    %v708 = vmul.f32 %v690, 0.2
    %v709 = vmul.f32 %v695, 0.2
    %v710 = vmul.f32 %v700, 0.2
    %v711 = vsel %vm703, %v685, %v707
    %v712 = vsel %vm704, %v690, %v708
    %v713 = vsel %vm705, %v695, %v709
    %v714 = vsel %vm706, %v700, %v710
    %716 = vset.pattern.permute.xlu0 0
    %717 = vperm.xlu0 %716, %v711
    %v718 = vpop.permute.xlu0 %717
    %721 = vset.pattern.permute.xlu0 0
    %722 = vperm.xlu0 %721, %v712
    %v723 = vpop.permute.xlu0 %722
    %726 = vset.pattern.permute.xlu0 0
    %727 = vperm.xlu0 %726, %v713
    %v728 = vpop.permute.xlu0 %727
    %731 = vset.pattern.permute.xlu0 0
    %732 = vperm.xlu0 %731, %v714
    %v733 = vpop.permute.xlu0 %732
    %v735 = vmul.f32 %v718, %v545
    %v736 = vmul.f32 %v723, %v546
    %v737 = vmul.f32 %v728, %v547
    %v738 = vmul.f32 %v733, %v548
    %vm739 = vcmask 261120
    %v741 = vsel %vm739, %v589, 0
    %v744 = vsel %vm739, %v590, 0
    %746 = vmatprep.subr.mxu0 0.0
    %747 = vmatpush1.msra.mxu0 %v735
    %748 = vmatprep.subr.mxu0 0.0
    %749 = vmatpush1.msra.mxu0 %v736
    %750 = vmatprep.subr.mxu0 0.0
    %751 = vmatpush1.msra.mxu0 %v737
    %752 = vmatprep.subr.mxu0 0.0
    %753 = vmatpush1.msra.mxu0 %v738
    %754 = vmatprep.subr.mxu0 0.0
    %755 = vmatpush1.msra.mxu0 0.0
    %756 = vmatprep.subr.mxu0 0.0
    %757 = vmatpush1.msra.mxu0 0.0
    %758 = vmatprep.subr.mxu0 0.0
    %759 = vmatpush1.msra.mxu0 0.0
    %760 = vmatprep.subr.mxu0 0.0
    %761 = vmatpush1.msra.mxu0 0.0
    %762 = vmatprep.subr.mxu0 0.0
    %763 = vmatpush1.msra.mxu0 0.0
    %764 = vmatprep.subr.mxu0 0.0
    %765 = vmatpush1.msra.mxu0 0.0
    %766 = vmatprep.subr.mxu0 0.0
    %767 = vmatpush1.msra.mxu0 0.0
    %768 = vmatprep.subr.mxu0 0.0
    %769 = vmatpush1.msra.mxu0 0.0
    %770 = vmatprep.subr.mxu0 0.0
    %771 = vmatpush1.msra.mxu0 0.0
    %772 = vmatprep.subr.mxu0 0.0
    %773 = vmatpush1.msra.mxu0 0.0
    %774 = vmatprep.subr.mxu0 0.0
    %775 = vmatpush1.msra.mxu0 0.0
    %776 = vmatprep.subr.mxu0 0.0
    %777 = vmatpush1.msra.mxu0 0.0
    %778 = vmatprep.subr.mxu0 0.0
    %779 = vmatpush1.msra.mxu0 0.0
    %780 = vmatprep.subr.mxu0 0.0
    %781 = vmatpush1.msra.mxu0 0.0
    %782 = vmatprep.subr.mxu0 0.0
    %783 = vmatpush1.msra.mxu0 0.0
    %784 = vmatprep.subr.mxu0 0.0
    %785 = vmatpush1.msra.mxu0 0.0
    %786 = vmatprep.subr.mxu0 0.0
    %787 = vmatpush1.msra.mxu0 0.0
    %788 = vmatprep.subr.mxu0 0.0
    %789 = vmatpush1.msra.mxu0 0.0
    %790 = vmatprep.subr.mxu0 0.0
    %791 = vmatpush1.msra.mxu0 0.0
    %792 = vmatprep.subr.mxu0 0.0
    %793 = vmatpush1.msra.mxu0 0.0
    %794 = vmatprep.subr.mxu0 0.0
    %795 = vmatpush1.msra.mxu0 0.0
    %796 = vmatprep.subr.mxu0 0.0
    %797 = vmatpush1.msra.mxu0 0.0
    %798 = vmatprep.subr.mxu0 0.0
    %799 = vmatpush1.msra.mxu0 0.0
    %800 = vmatprep.subr.mxu0 0.0
    %801 = vmatpush1.msra.mxu0 0.0
    %802 = vmatprep.subr.mxu0 0.0
    %803 = vmatpush1.msra.mxu0 0.0
    %804 = vmatprep.subr.mxu0 0.0
    %805 = vmatpush1.msra.mxu0 0.0
    %806 = vmatprep.subr.mxu0 0.0
    %807 = vmatpush1.msra.mxu0 0.0
    %808 = vmatprep.subr.mxu0 0.0
    %809 = vmatpush1.msra.mxu0 0.0
    %810 = vmatprep.mubr.f32.mxu0 0.0
    %811 = vmatmul.mubr.f32.gmra.mrb[0].mxu0 %v741
    %v812 = vpop.f32.mrb[0].mxu0
    %v813 = vadd.f32 0.0, %v812
    %v814 = vpop.f32.mrb[0].mxu0
    %815 = vmatprep.mubr.f32.mxu0 0.0
    %816 = vmatmul.mubr.f32.gmra.mrb[0].mxu0 %v744
    %v817 = vpop.f32.mrb[0].mxu0
    %v818 = vadd.f32 0.0, %v817
    %v819 = vpop.f32.mrb[0].mxu0
    %820 = vdwg.mxu0
    %821 = vmatprep.subr.mxu0 0.0
    %822 = vmatpush1.msra.mxu0 %v545
    %823 = vmatprep.subr.mxu0 0.0
    %824 = vmatpush1.msra.mxu0 %v546
    %825 = vmatprep.subr.mxu0 0.0
    %826 = vmatpush1.msra.mxu0 %v547
    %827 = vmatprep.subr.mxu0 0.0
    %828 = vmatpush1.msra.mxu0 %v548
    %829 = vmatprep.subr.mxu0 0.0
    %830 = vmatpush1.msra.mxu0 0.0
    %831 = vmatprep.subr.mxu0 0.0
    %832 = vmatpush1.msra.mxu0 0.0
    %833 = vmatprep.subr.mxu0 0.0
    %834 = vmatpush1.msra.mxu0 0.0
    %835 = vmatprep.subr.mxu0 0.0
    %836 = vmatpush1.msra.mxu0 0.0
    %837 = vmatprep.subr.mxu0 0.0
    %838 = vmatpush1.msra.mxu0 0.0
    %839 = vmatprep.subr.mxu0 0.0
    %840 = vmatpush1.msra.mxu0 0.0
    %841 = vmatprep.subr.mxu0 0.0
    %842 = vmatpush1.msra.mxu0 0.0
    %843 = vmatprep.subr.mxu0 0.0
    %844 = vmatpush1.msra.mxu0 0.0
    %845 = vmatprep.subr.mxu0 0.0
    %846 = vmatpush1.msra.mxu0 0.0
    %847 = vmatprep.subr.mxu0 0.0
    %848 = vmatpush1.msra.mxu0 0.0
    %849 = vmatprep.subr.mxu0 0.0
    %850 = vmatpush1.msra.mxu0 0.0
    %851 = vmatprep.subr.mxu0 0.0
    %852 = vmatpush1.msra.mxu0 0.0
    %853 = vmatprep.subr.mxu0 0.0
    %854 = vmatpush1.msra.mxu0 0.0
    %855 = vmatprep.subr.mxu0 0.0
    %856 = vmatpush1.msra.mxu0 0.0
    %857 = vmatprep.subr.mxu0 0.0
    %858 = vmatpush1.msra.mxu0 0.0
    %859 = vmatprep.subr.mxu0 0.0
    %860 = vmatpush1.msra.mxu0 0.0
    %861 = vmatprep.subr.mxu0 0.0
    %862 = vmatpush1.msra.mxu0 0.0
    %863 = vmatprep.subr.mxu0 0.0
    %864 = vmatpush1.msra.mxu0 0.0
    %865 = vmatprep.subr.mxu0 0.0
    %866 = vmatpush1.msra.mxu0 0.0
    %867 = vmatprep.subr.mxu0 0.0
    %868 = vmatpush1.msra.mxu0 0.0
    %869 = vmatprep.subr.mxu0 0.0
    %870 = vmatpush1.msra.mxu0 0.0
    %871 = vmatprep.subr.mxu0 0.0
    %872 = vmatpush1.msra.mxu0 0.0
    %873 = vmatprep.subr.mxu0 0.0
    %874 = vmatpush1.msra.mxu0 0.0
    %875 = vmatprep.subr.mxu0 0.0
    %876 = vmatpush1.msra.mxu0 0.0
    %877 = vmatprep.subr.mxu0 0.0
    %878 = vmatpush1.msra.mxu0 0.0
    %879 = vmatprep.subr.mxu0 0.0
    %880 = vmatpush1.msra.mxu0 0.0
    %881 = vmatprep.subr.mxu0 0.0
    %882 = vmatpush1.msra.mxu0 0.0
    %883 = vmatprep.subr.mxu0 0.0
    %884 = vmatpush1.msra.mxu0 0.0
    %885 = vmatprep.mubr.f32.mxu0 0.0
    %886 = vmatmul.mubr.f32.gmra.mrb[0].mxu0 %v741
    %v887 = vpop.f32.mrb[0].mxu0
    %v888 = vadd.f32 0.0, %v887
    %v889 = vpop.f32.mrb[0].mxu0
    %890 = vmatprep.mubr.f32.mxu0 0.0
    %891 = vmatmul.mubr.f32.gmra.mrb[0].mxu0 %v744
    %v892 = vpop.f32.mrb[0].mxu0
    %v893 = vadd.f32 0.0, %v892
    %v894 = vpop.f32.mrb[0].mxu0
    %895 = vdwg.mxu0
    %vm896 = vcmp.gt.f32.partialorder %v888, 0.0
    %vm897 = vcmp.gt.f32.partialorder %v893, 0.0
    %v898 = vsel %vm896, %v813, -1e+30
    %v899 = vsel %vm897, %v818, -1e+30
    %v900 = vsel %vm605, %v898, -inf
    %901 = vmax.xlane.f32.xlu0 %v900
    %v902 = vpop.xlane.xlu0 %901
    %v903 = vsel %vm605, %v899, -inf
    %904 = vmax.xlane.f32.xlu0 %v903
    %v905 = vpop.xlane.xlu0 %904
    %v906 = vsub.f32 %v898, %v902
    %v907 = vsub.f32 %v899, %v905
    %v908 = vmul.f32 %v906, 1.442695
    %v909 = vpow.pop %v908
    %v910 = vmul.f32 %v907, 1.442695
    %v911 = vpow.pop %v910
    %vm912 = vcmp.gt.f32.partialorder %v898, -1e+29
    %vm913 = vcmp.gt.f32.partialorder %v899, -1e+29
    %v914 = vsel %vm912, %v909, 0.0
    %v915 = vsel %vm913, %v911, 0.0
    %v916 = vsel %vm605, %v914, 0.0
    %917 = vadd.xlane.f32.xlu0 %v916
    %v918 = vpop.xlane.xlu0 %917
    %v919 = vsel %vm605, %v915, 0.0
    %920 = vadd.xlane.f32.xlu0 %v919
    %v921 = vpop.xlane.xlu0 %920
    %v922 = vmax.f32 %v918, 1e-20
    %v923 = vmax.f32 %v921, 1e-20
    %v924 = vrcp.pop %v922
    %v925 = vrcp.pop %v923
    %v926 = vmul.f32 %v914, %v924
    %v927 = vmul.f32 %v915, %v925
    %v929 = vsel %vm605, %v926, 0
    %v932 = vsel %vm605, %v927, 0
    %934 = vmatprep.subr.mxu0 0.0
    %935 = vmatpush1.msra.mxu0 %v133
    %936 = vmatprep.subr.mxu0 0.0
    %937 = vmatpush1.msra.mxu0 %v134
    %938 = vmatprep.subr.mxu0 0.0
    %939 = vmatpush1.msra.mxu0 0.0
    %940 = vmatprep.subr.mxu0 0.0
    %941 = vmatpush1.msra.mxu0 0.0
    %942 = vmatprep.subr.mxu0 0.0
    %943 = vmatpush1.msra.mxu0 0.0
    %944 = vmatprep.subr.mxu0 0.0
    %945 = vmatpush1.msra.mxu0 0.0
    %946 = vmatprep.subr.mxu0 0.0
    %947 = vmatpush1.msra.mxu0 0.0
    %948 = vmatprep.subr.mxu0 0.0
    %949 = vmatpush1.msra.mxu0 0.0
    %950 = vmatprep.subr.mxu0 0.0
    %951 = vmatpush1.msra.mxu0 0.0
    %952 = vmatprep.subr.mxu0 0.0
    %953 = vmatpush1.msra.mxu0 0.0
    %954 = vmatprep.subr.mxu0 0.0
    %955 = vmatpush1.msra.mxu0 0.0
    %956 = vmatprep.subr.mxu0 0.0
    %957 = vmatpush1.msra.mxu0 0.0
    %958 = vmatprep.subr.mxu0 0.0
    %959 = vmatpush1.msra.mxu0 0.0
    %960 = vmatprep.subr.mxu0 0.0
    %961 = vmatpush1.msra.mxu0 0.0
    %962 = vmatprep.subr.mxu0 0.0
    %963 = vmatpush1.msra.mxu0 0.0
    %964 = vmatprep.subr.mxu0 0.0
    %965 = vmatpush1.msra.mxu0 0.0
    %966 = vmatprep.subr.mxu0 0.0
    %967 = vmatpush1.msra.mxu0 0.0
    %968 = vmatprep.subr.mxu0 0.0
    %969 = vmatpush1.msra.mxu0 0.0
    %970 = vmatprep.subr.mxu0 0.0
    %971 = vmatpush1.msra.mxu0 0.0
    %972 = vmatprep.subr.mxu0 0.0
    %973 = vmatpush1.msra.mxu0 0.0
    %974 = vmatprep.subr.mxu0 0.0
    %975 = vmatpush1.msra.mxu0 0.0
    %976 = vmatprep.subr.mxu0 0.0
    %977 = vmatpush1.msra.mxu0 0.0
    %978 = vmatprep.subr.mxu0 0.0
    %979 = vmatpush1.msra.mxu0 0.0
    %980 = vmatprep.subr.mxu0 0.0
    %981 = vmatpush1.msra.mxu0 0.0
    %982 = vmatprep.subr.mxu0 0.0
    %983 = vmatpush1.msra.mxu0 0.0
    %984 = vmatprep.subr.mxu0 0.0
    %985 = vmatpush1.msra.mxu0 0.0
    %986 = vmatprep.subr.mxu0 0.0
    %987 = vmatpush1.msra.mxu0 0.0
    %988 = vmatprep.subr.mxu0 0.0
    %989 = vmatpush1.msra.mxu0 0.0
    %990 = vmatprep.subr.mxu0 0.0
    %991 = vmatpush1.msra.mxu0 0.0
    %992 = vmatprep.subr.mxu0 0.0
    %993 = vmatpush1.msra.mxu0 0.0
    %994 = vmatprep.subr.mxu0 0.0
    %995 = vmatpush1.msra.mxu0 0.0
    %996 = vmatprep.subr.mxu0 0.0
    %997 = vmatpush1.msra.mxu0 0.0
    %998 = vmatprep.mubr.f32.mxu0 0.0
    %999 = vmatmul.mubr.f32.gmra.mrb[0].mxu0 %v929
    %v1000 = vpop.f32.mrb[0].mxu0
    %v1001 = vadd.f32 0.0, %v1000
    %v1002 = vpop.f32.mrb[0].mxu0
    %1003 = vmatprep.mubr.f32.mxu0 0.0
    %1004 = vmatmul.mubr.f32.gmra.mrb[0].mxu0 %v932
    %v1005 = vpop.f32.mrb[0].mxu0
    %v1006 = vadd.f32 0.0, %v1005
    %v1007 = vpop.f32.mrb[0].mxu0
    %1008 = vdwg.mxu0
    %v1010 = vsel %vm605, %v573, 0
    %v1013 = vsel %vm605, %v574, 0
    %v1016 = vsel %vm605, %v575, 0
    %v1019 = vsel %vm605, %v576, 0
    %1021 = vmatprep.subr.mxu0 0.0
    %1022 = vmatpush1.msra.mxu0 %v926
    %1023 = vmatprep.subr.mxu0 0.0
    %1024 = vmatpush1.msra.mxu0 %v927
    %1025 = vmatprep.subr.mxu0 0.0
    %1026 = vmatpush1.msra.mxu0 0.0
    %1027 = vmatprep.subr.mxu0 0.0
    %1028 = vmatpush1.msra.mxu0 0.0
    %1029 = vmatprep.subr.mxu0 0.0
    %1030 = vmatpush1.msra.mxu0 0.0
    %1031 = vmatprep.subr.mxu0 0.0
    %1032 = vmatpush1.msra.mxu0 0.0
    %1033 = vmatprep.subr.mxu0 0.0
    %1034 = vmatpush1.msra.mxu0 0.0
    %1035 = vmatprep.subr.mxu0 0.0
    %1036 = vmatpush1.msra.mxu0 0.0
    %1037 = vmatprep.subr.mxu0 0.0
    %1038 = vmatpush1.msra.mxu0 0.0
    %1039 = vmatprep.subr.mxu0 0.0
    %1040 = vmatpush1.msra.mxu0 0.0
    %1041 = vmatprep.subr.mxu0 0.0
    %1042 = vmatpush1.msra.mxu0 0.0
    %1043 = vmatprep.subr.mxu0 0.0
    %1044 = vmatpush1.msra.mxu0 0.0
    %1045 = vmatprep.subr.mxu0 0.0
    %1046 = vmatpush1.msra.mxu0 0.0
    %1047 = vmatprep.subr.mxu0 0.0
    %1048 = vmatpush1.msra.mxu0 0.0
    %1049 = vmatprep.subr.mxu0 0.0
    %1050 = vmatpush1.msra.mxu0 0.0
    %1051 = vmatprep.subr.mxu0 0.0
    %1052 = vmatpush1.msra.mxu0 0.0
    %1053 = vmatprep.subr.mxu0 0.0
    %1054 = vmatpush1.msra.mxu0 0.0
    %1055 = vmatprep.subr.mxu0 0.0
    %1056 = vmatpush1.msra.mxu0 0.0
    %1057 = vmatprep.subr.mxu0 0.0
    %1058 = vmatpush1.msra.mxu0 0.0
    %1059 = vmatprep.subr.mxu0 0.0
    %1060 = vmatpush1.msra.mxu0 0.0
    %1061 = vmatprep.subr.mxu0 0.0
    %1062 = vmatpush1.msra.mxu0 0.0
    %1063 = vmatprep.subr.mxu0 0.0
    %1064 = vmatpush1.msra.mxu0 0.0
    %1065 = vmatprep.subr.mxu0 0.0
    %1066 = vmatpush1.msra.mxu0 0.0
    %1067 = vmatprep.subr.mxu0 0.0
    %1068 = vmatpush1.msra.mxu0 0.0
    %1069 = vmatprep.subr.mxu0 0.0
    %1070 = vmatpush1.msra.mxu0 0.0
    %1071 = vmatprep.subr.mxu0 0.0
    %1072 = vmatpush1.msra.mxu0 0.0
    %1073 = vmatprep.subr.mxu0 0.0
    %1074 = vmatpush1.msra.mxu0 0.0
    %1075 = vmatprep.subr.mxu0 0.0
    %1076 = vmatpush1.msra.mxu0 0.0
    %1077 = vmatprep.subr.mxu0 0.0
    %1078 = vmatpush1.msra.mxu0 0.0
    %1079 = vmatprep.subr.mxu0 0.0
    %1080 = vmatpush1.msra.mxu0 0.0
    %1081 = vmatprep.subr.mxu0 0.0
    %1082 = vmatpush1.msra.mxu0 0.0
    %1083 = vmatprep.subr.mxu0 0.0
    %1084 = vmatpush1.msra.mxu0 0.0
    %1085 = vmatprep.mubr.f32.mxu0 0.0
    %1086 = vmatmul.mubr.f32.gmra.mrb[0].mxu0 %v1010
    %v1087 = vpop.f32.mrb[0].mxu0
    %v1088 = vadd.f32 0.0, %v1087
    %v1089 = vpop.f32.mrb[0].mxu0
    %1090 = vmatprep.mubr.f32.mxu0 0.0
    %1091 = vmatmul.mubr.f32.gmra.mrb[0].mxu0 %v1013
    %v1092 = vpop.f32.mrb[0].mxu0
    %v1093 = vadd.f32 0.0, %v1092
    %v1094 = vpop.f32.mrb[0].mxu0
    %1095 = vmatprep.mubr.f32.mxu0 0.0
    %1096 = vmatmul.mubr.f32.gmra.mrb[0].mxu0 %v1016
    %v1097 = vpop.f32.mrb[0].mxu0
    %v1098 = vadd.f32 0.0, %v1097
    %v1099 = vpop.f32.mrb[0].mxu0
    %1100 = vmatprep.mubr.f32.mxu0 0.0
    %1101 = vmatmul.mubr.f32.gmra.mrb[0].mxu0 %v1019
    %v1102 = vpop.f32.mrb[0].mxu0
    %v1103 = vadd.f32 0.0, %v1102
    %v1104 = vpop.f32.mrb[0].mxu0
    %1105 = vdwg.mxu0
    %v1106 = vmul.f32 %v1088, %v545
    %v1107 = vmul.f32 %v1093, %v546
    %v1108 = vmul.f32 %v1098, %v547
    %v1109 = vmul.f32 %v1103, %v548
    %v1110 = vsel %vm605, %v1106, 0.0
    %1111 = vadd.xlane.f32.xlu0 %v1110
    %v1112 = vpop.xlane.xlu0 %1111
    %v1113 = vsel %vm605, %v1107, 0.0
    %1114 = vadd.xlane.f32.xlu0 %v1113
    %v1115 = vpop.xlane.xlu0 %1114
    %v1116 = vsel %vm605, %v1108, 0.0
    %1117 = vadd.xlane.f32.xlu0 %v1116
    %v1118 = vpop.xlane.xlu0 %1117
    %v1119 = vsel %vm605, %v1109, 0.0
    %1120 = vadd.xlane.f32.xlu0 %v1119
    %v1121 = vpop.xlane.xlu0 %1120
    %vm1122 = vcmp.eq.s32.totalorder %v520, 0
    %1124 = vset.pattern.permute.xlu0 0
    %1125 = vperm.xlu0 %1124, %v1001
    %v1126 = vpop.permute.xlu0 %1125
    %1129 = vset.pattern.permute.xlu0 0
    %1130 = vperm.xlu0 %1129, %v1006
    %v1131 = vpop.permute.xlu0 %1130
    %v1133 = vsel %vm1122, %v1126, 0.0
    %v1134 = vsel %vm1122, %v1131, 0.0
    %1135 = vst [vmem:[#allocation10] sm:$0xff] %v1133
    %1136 = vst [vmem:[#allocation10 + $0x8] sm:$0xff] %v1134
    %v1137 = vsel %vm1122, %v1112, 0.0
    %v1138 = vsel %vm1122, %v1115, 0.0
    %v1139 = vsel %vm1122, %v1118, 0.0
    %v1140 = vsel %vm1122, %v1121, 0.0
    %vm1141 = vcmp.eq.s32.totalorder %v520, 1
    %1143 = vset.pattern.permute.xlu0 0
    %1144 = vperm.xlu0 %1143, %v485
    %v1145 = vpop.permute.xlu0 %1144
    %1148 = vset.pattern.permute.xlu0 0
    %1149 = vperm.xlu0 %1148, %v486
    %v1150 = vpop.permute.xlu0 %1149
    %1153 = vset.pattern.permute.xlu0 0
    %1154 = vperm.xlu0 %1153, %v487
    %v1155 = vpop.permute.xlu0 %1154
    %1158 = vset.pattern.permute.xlu0 0
    %1159 = vperm.xlu0 %1158, %v488
    %v1160 = vpop.permute.xlu0 %1159
    %v1162 = vsel %vm1141, %v1145, %v1137
    %v1163 = vsel %vm1141, %v1150, %v1138
    %v1164 = vsel %vm1141, %v1155, %v1139
    %v1165 = vsel %vm1141, %v1160, %v1140
    %vm1166 = vcmp.eq.s32.totalorder %v520, 2
    %1168 = vset.pattern.permute.xlu0 0
    %1169 = vperm.xlu0 %1168, %v511
    %v1170 = vpop.permute.xlu0 %1169
    %1173 = vset.pattern.permute.xlu0 0
    %1174 = vperm.xlu0 %1173, %v512
    %v1175 = vpop.permute.xlu0 %1174
    %1178 = vset.pattern.permute.xlu0 0
    %1179 = vperm.xlu0 %1178, %v513
    %v1180 = vpop.permute.xlu0 %1179
    %1183 = vset.pattern.permute.xlu0 0
    %1184 = vperm.xlu0 %1183, %v514
    %v1185 = vpop.permute.xlu0 %1184
    %v1187 = vsel %vm1166, %v1170, %v1162
    %v1188 = vsel %vm1166, %v1175, %v1163
    %v1189 = vsel %vm1166, %v1180, %v1164
    %v1190 = vsel %vm1166, %v1185, %v1165
    %1191 = vst [vmem:[#allocation11] sm:$0xff] %v1187
    %1192 = vst [vmem:[#allocation11 + $0x8] sm:$0xff] %v1188
    %1193 = vst [vmem:[#allocation11 + $0x10] sm:$0xff] %v1189
    %1194 = vst [vmem:[#allocation11 + $0x18] sm:$0xff] %v1190
    // Predicated region
    $region54: #{tpu_custom_call.1} parent=1 // pred_check
      _
    $region55: #{tpu_custom_call.1} parent=1 // pred_check_branch
      %1196 = sbr.rel (0) target = $region57
    $region56: #{tpu_custom_call.1} parent=1 // pred_region
      %s1198 = ssub.s32 256, 256
      %1199 = vsyncadd [#allocation5], %s1198
      %s1200 = sshll.u32 [#allocation10], 4
      %s1201 = int_to_ptr.vmem [resolvable:$true] %s1200
      %1206 = dma.vmem_to_hbm [thread:$0]  %s1201, 256, %s10, [#allocation5], 128, 128, 8
    $region57: #{tpu_custom_call.1} parent=1 // pred_fallthru
      _
    // Predicated region
    $region58: #{tpu_custom_call.1} parent=1 // pred_check
      _
    $region59: #{tpu_custom_call.1} parent=1 // pred_check_branch
      %1208 = sbr.rel (0) target = $region61
    $region60: #{tpu_custom_call.1} parent=1 // pred_region
      %s1210 = ssub.s32 512, 512
      %1211 = vsyncadd [#allocation12], %s1210
      %s1212 = sshll.u32 [#allocation11], 4
      %s1213 = int_to_ptr.vmem [resolvable:$true] %s1212
      %1218 = dma.vmem_to_hbm [thread:$0]  %s1213, 512, %s11, [#allocation12], 128, 128, 8
    $region61: #{tpu_custom_call.1} parent=1 // pred_fallthru
      _
    // Predicated region
    $region62: #{tpu_custom_call.1} parent=1 // pred_check
      _
    $region63: #{tpu_custom_call.1} parent=1 // pred_check_branch
      %1220 = sbr.rel (0) target = $region65
    $region64: #{tpu_custom_call.1} parent=1 // pred_region
      %1221 = dma.done [#allocation5], 256
    $region65: #{tpu_custom_call.1} parent=1 // pred_fallthru
      _
    // Predicated region
    $region66: #{tpu_custom_call.1} parent=1 // pred_check
      _
    $region67: #{tpu_custom_call.1} parent=1 // pred_check_branch
      %1223 = sbr.rel (0) target = $region69
    $region68: #{tpu_custom_call.1} parent=1 // pred_region
      %1224 = dma.done [#allocation12], 512
    $region69: #{tpu_custom_call.1} parent=1 // pred_fallthru
      _
    %1225 = vsyncpa [#allocation5], 1
    %1226 = vsyncpa [#allocation12], 1
    %1227 = vsyncpa [#allocation6], 1
    %1228 = vsyncpa [#allocation8], 1

</llo_original>
